<compile_context>
chip_gen: v7x
topology: tpu7x:2x2x1
jax: 0.10.0
libtpu: 0.0.40
codegen_flags: <defaults>
</compile_context>

<pallas_src>
import jax
import jax.numpy as jnp
from jax import lax
from jax.experimental import pallas as pl
from jax.experimental.pallas import tpu as pltpu


_EPS_SQ = 1e-24                       # (F.normalize eps=1e-12)**2, used under rsqrt
_VMEM_TILE_BUDGET = 36 * 1024 * 1024  # resident-tile budget (headroom on v7x's 64 MiB)
_VMEM_LIMIT_BYTES = 48 * 1024 * 1024  # scoped-VMEM request (> 16/32 MiB defaults)


def _tensorcores_per_chip():
    """Best-effort TensorCore count per chip (perf-only; never affects correctness)."""
    try:
        kind = jax.devices()[0].device_kind.lower()
    except Exception:
        return 1
    if "lite" in kind or "v5e" in kind or "v6e" in kind:
        return 1
    if "v7" in kind or "v4" in kind or "v5p" in kind:
        return 2
    return 1


def _vmem_estimate(tq, tt, n, op_bytes):
    # double-buffered matmul operands + (TQ,TT) f32 temporaries (sim/exp/selects)
    # + small per-row columns; conservative, leaves room for compiler scratch.
    return (2 * tq * n * op_bytes + 2 * tt * n * op_bytes
            + 4 * tq * tt * 4 + 12 * tq * 4 + 2 * tt * 4)


def _choose_tiles(b, m, n, op_bytes):
    # TODO(synk): pad B/M up to a tile multiple instead of falling back to full-dim
    # blocks when the dims are not 8-aligned.
    tq_cands = [c for c in (1024, 512, 256, 128, 64, 32, 16, 8)
                if c <= b and b % c == 0] or [b]
    tt_cands = [c for c in (1024, 512, 256, 128)
                if c <= m and m % c == 0] or [m]
    for tq in tq_cands:                      # prefer big TQ (fewer passes over z_c)
        for tt in tt_cands:
            if _vmem_estimate(tq, tt, n, op_bytes) <= _VMEM_TILE_BUDGET:
                return tq, tt
    return tq_cands[-1], tt_cands[-1]


def _infonce_kernel(zp_ref, zc_ref, labq_ref, labt_ref, valid_ref, cnt_ref, out_ref,
                    lneg_acc, psim_acc):
    # grid = (query block i [parallel], slot k [reduction], target block j [reduction])
    k = pl.program_id(1)
    j = pl.program_id(2)

    @pl.when(jnp.logical_and(k == 0, j == 0))
    def _():
        lneg_acc[...] = jnp.zeros_like(lneg_acc)
        psim_acc[...] = jnp.zeros_like(psim_acc)

    # sim[q, m] = <z_p[q], z_c[m, slot k]> / T
    # (normalization and 1/T are folded in the wrapper; operands arrive pre-cast).
    sim = lax.dot_general(zp_ref[...], zc_ref[...], (((1,), (1,)), ((), ())),
                          preferred_element_type=jnp.float32)          # (TQ, TT) f32

    posb = labq_ref[...] == labt_ref[...]      # (TQ,1)==(1,TT) -> (TQ,TT) bool (VPU)
    valid = valid_ref[...]                     # (TQ,1) f32 == mask[q, k]

    e = jnp.exp(sim)                           # unshifted, matches reference numerics
    zero = jnp.zeros_like(sim)
    lneg_acc[...] += valid * jnp.sum(jnp.where(posb, zero, e), axis=1, keepdims=True)
    psim_acc[...] += valid * jnp.sum(jnp.where(posb, sim, zero), axis=1, keepdims=True)

    @pl.when(jnp.logical_and(k == pl.num_programs(1) - 1,
                             j == pl.num_programs(2) - 1))
    def _():
        cnt = cnt_ref[...]                     # hoisted (#same-label) * (#valid slots)
        loss = jnp.log(lneg_acc[...]) - psim_acc[...] / jnp.maximum(cnt, 1.0)
        out_ref[...] = jnp.where(cnt > 0.0, loss, jnp.zeros_like(loss))


def supervised_crossmodal_infonce(z_p, z_c, gt_label, mask=None, temperature=0.07,
                                  matmul_dtype=jnp.bfloat16):
    """Forward of SupervisedCrossModalInfoNCE.

    matmul_dtype: dtype the MXU operands are streamed in. bf16 (default) halves the
    dominant z_c HBM traffic and is the native MXU width on v5e/v6e/v7x; pass
    jnp.float32 for bit-tight parity (e.g. at very small temperatures).
    """
    z_p = z_p.astype(jnp.float32)
    B, N = z_p.shape

    if mask is None:
        # no-mask branch == masked branch with K=1 and an all-ones mask
        z_c3 = z_c.reshape(B, 1, N).astype(jnp.float32)
        mask2d = jnp.ones((B, 1), jnp.float32)
    else:
        # NOTE: mask must be 0/1-valued (as in the reference module's usage).
        z_c3 = z_c.astype(jnp.float32)
        mask2d = mask.astype(jnp.float32)
    M, K, _ = z_c3.shape                      # M == B targets, K slots each

    # ---- tiny wrapper glue: labels, pre-normalization, layout plumbing -------------
    labels = jnp.argmax(gt_label, axis=1).astype(jnp.int32)   # torch.argmax tie-break
    labels_col = labels.reshape(B, 1)
    labels_row = labels.reshape(1, M)

    # Pre-normalize both embeddings in f32, fold 1/T into the queries, cast the MXU
    # operands once here (z_c is the dominant HBM stream; streamed in matmul_dtype and
    # never re-normalized inside the kernel).
    inv_np = lax.rsqrt(jnp.maximum(jnp.sum(z_p * z_p, axis=-1, keepdims=True), _EPS_SQ))
    zp_n = (z_p * (inv_np * (1.0 / float(temperature)))).astype(matmul_dtype)
    inv_nc = lax.rsqrt(jnp.maximum(jnp.sum(z_c3 * z_c3, axis=-1, keepdims=True), _EPS_SQ))
    # slot-major layout: row k*M + m == z_c[m, k]; each grid step streams a contiguous
    # lane-dense (TT, N) slab.
    zc_t = jnp.swapaxes(z_c3 * inv_nc, 0, 1).reshape(K * M, N).astype(matmul_dtype)
    mask_t = jnp.swapaxes(mask2d, 0, 1).reshape(K * B, 1)      # row k*B + q == mask[q,k]

    # Hoisted positive count: cnt[q] = (#targets with same label) * (#valid slots).
    pos_count = jnp.sum((labels_col == labels_row).astype(jnp.float32),
                        axis=1, keepdims=True)
    cnt = pos_count * jnp.sum(mask2d, axis=1, keepdims=True)   # (B, 1) f32

    # ---- tiling ---------------------------------------------------------------------
    op_bytes = jnp.dtype(matmul_dtype).itemsize
    TQ, TT = _choose_tiles(B, M, N, op_bytes)

    # v7x / megacore: make sure the parallel query axis has >= one block per core
    # (otherwise the whole grid serializes onto a single TensorCore).
    cores = _tensorcores_per_chip()
    if cores > 1 and B // TQ < cores:
        for c in (512, 256, 128, 64, 32, 16, 8):
            if c <= B // cores and B % c == 0 and B // c >= cores:
                TQ = c
                break
    NQ, NT = B // TQ, M // TT

    loss_rows = pl.pallas_call(
        _infonce_kernel,
        out_shape=jax.ShapeDtypeStruct((B, 1), jnp.float32),
        grid=(NQ, K, NT),
        in_specs=[
            pl.BlockSpec((TQ, N), lambda i, k, j: (i, 0)),            # z_p (resident over k,j)
            pl.BlockSpec((TT, N), lambda i, k, j: (k * NT + j, 0)),   # z_c slot-major slab
            pl.BlockSpec((TQ, 1), lambda i, k, j: (i, 0)),            # query labels (i32)
            pl.BlockSpec((1, TT), lambda i, k, j: (0, j)),            # target labels (i32)
            pl.BlockSpec((TQ, 1), lambda i, k, j: (k * NQ + i, 0)),   # mask[q, k]
            pl.BlockSpec((TQ, 1), lambda i, k, j: (i, 0)),            # hoisted cnt[q]
        ],
        out_specs=pl.BlockSpec((TQ, 1), lambda i, k, j: (i, 0)),
        scratch_shapes=[
            pltpu.VMEM((TQ, 1), jnp.float32),    # l_neg accumulator
            pltpu.VMEM((TQ, 1), jnp.float32),    # sum(sim * pos * valid) accumulator
        ],
        compiler_params=pltpu.CompilerParams(
            dimension_semantics=("parallel", "arbitrary", "arbitrary"),
            vmem_limit_bytes=_VMEM_LIMIT_BYTES),
    )(zp_n, zc_t, labels_col, labels_row, mask_t, cnt)

    # trivial glue: mean over the B per-row losses (kept outside so the query axis can
    # stay "parallel" across TensorCores without a racy shared (1,1) accumulator).
    # TODO(synk): if B >> max feasible TQ, restructure so z_c streams exactly once
    # (resident (B,1) accumulators + bf16 query cache, query axis innermost).
    return jnp.mean(loss_rows)


# ---------------- pure-JAX reference (mirror of the PyTorch module), for validation ----
def _reference_loss(z_p, z_c, gt_label, mask=None, temperature=0.07):
    zp = z_p / jnp.maximum(jnp.linalg.norm(z_p, axis=-1, keepdims=True), 1e-12)
    zc = z_c / jnp.maximum(jnp.linalg.norm(z_c, axis=-1, keepdims=True), 1e-12)
    labels = jnp.argmax(gt_label, axis=1)
    pos = (labels[:, None] == labels[None, :]).astype(jnp.float32)
    neg = 1.0 - pos
    if mask is None:
        sim = zp @ zc.T / temperature
        e = jnp.exp(sim)
        lneg = jnp.sum(e * neg, axis=1, keepdims=True)
        lbp = -jnp.log(e / lneg) * pos
        c = jnp.sum((lbp != 0).astype(jnp.float32), axis=1, keepdims=True)
        s = jnp.sum(lbp, axis=1, keepdims=True)
        row = jnp.where(c > 0, s / c, jnp.zeros_like(s))
        return jnp.mean(row)
    sim = jnp.einsum('bn,mkn->bmk', zp, zc) / temperature
    e = jnp.exp(sim)
    valid = jnp.broadcast_to(mask[:, None, :].astype(jnp.float32), e.shape)
    posk = jnp.broadcast_to(pos[:, :, None], e.shape)
    negk = jnp.broadcast_to(neg[:, :, None], e.shape)
    lneg = jnp.sum(e * valid * negk, axis=(1, 2))
    lbp = -jnp.log(e / lneg[:, None, None]) * posk * valid
    c = jnp.sum((lbp != 0).astype(jnp.float32), axis=(1, 2))
    s = jnp.sum(lbp, axis=(1, 2))
    row = jnp.where(c > 0, s / c, jnp.zeros_like(s))
    return jnp.mean(row)


if __name__ == "__main__":
    B, N, C, K = 8, 32, 4, 8
    key = jax.random.PRNGKey(0)
    k1, k2, k3, k4 = jax.random.split(key, 4)

    z_p = jax.random.normal(k1, (B, N), dtype=jnp.float32)
    z_c_flat = jax.random.normal(k2, (B, N), dtype=jnp.float32)      # no-mask branch z_c
    z_c_seq = jax.random.normal(k3, (B, K, N), dtype=jnp.float32)    # masked branch z_c

    labels_int = jnp.arange(B, dtype=jnp.int32) % C                  # positives & negatives
    gt_label = jax.nn.one_hot(labels_int, C, dtype=jnp.float32)      # (B, C)

    mask = jax.random.bernoulli(k4, 0.7, (B, K)).astype(jnp.float32)
    mask = mask.at[:, 0].set(1.0)                                    # >=1 valid slot per row

    ref_nomask = _reference_loss(z_p, z_c_flat, gt_label, None)
    ref_masked = _reference_loss(z_p, z_c_seq, gt_label, mask)

    # f32 MXU path: tight parity with the reference.
    for got, ref in (
        (supervised_crossmodal_infonce(z_p, z_c_flat, gt_label, None,
                                       matmul_dtype=jnp.float32), ref_nomask),
        (supervised_crossmodal_infonce(z_p, z_c_seq, gt_label, mask,
                                       matmul_dtype=jnp.float32), ref_masked),
    ):
        jax.block_until_ready(got)
        g, r = float(got), float(ref)
        assert abs(g - r) <= 2e-3 + 2e-3 * abs(r), ("f32", g, r)

    # bf16 MXU path (default / fast): operand rounding is amplified by exp(sim/T)
    # (|sim| up to ~14 at T=0.07), so the tolerance is looser in log space.
    for got, ref in (
        (supervised_crossmodal_infonce(z_p, z_c_flat, gt_label, None), ref_nomask),
        (supervised_crossmodal_infonce(z_p, z_c_seq, gt_label, mask), ref_masked),
    ):
        jax.block_until_ready(got)
        g, r = float(got), float(ref)
        assert abs(g - r) <= 2e-1 + 3e-2 * abs(r), ("bf16", g, r)

    print("KERNEL_OK")
</pallas_src>

<mosaic_0001>
module attributes {stable_mosaic.version = 11 : i64} {
  func.func @_infonce_kernel(%arg0: i32, %arg1: i32, %arg2: i32, %arg3: memref<8x32xf32, #tpu.memory_space<vmem>>, %arg4: memref<8x32xf32, #tpu.memory_space<vmem>>, %arg5: memref<8x1xi32, #tpu.memory_space<vmem>>, %arg6: memref<1x8xi32, #tpu.memory_space<vmem>>, %arg7: memref<8x1xf32, #tpu.memory_space<vmem>>, %arg8: memref<8x1xf32, #tpu.memory_space<vmem>>, %arg9: memref<8x1xf32, #tpu.memory_space<vmem>>, %arg10: memref<8x1xf32, #tpu.memory_space<vmem>>, %arg11: memref<8x1xf32, #tpu.memory_space<vmem>>) attributes {dimension_semantics = [#tpu.dimension_semantics<parallel>, #tpu.dimension_semantics<arbitrary>, #tpu.dimension_semantics<arbitrary>], iteration_bounds = array<i64: 1, 1, 1>, scalar_prefetch = 0 : i64, scratch_operands = 2 : i64, tpu.core_type = #tpu.core_type<tc>, window_params = [{transform_indices = @transform_0, window_bounds = array<i64: 8, 32>}, {transform_indices = @transform_1, window_bounds = array<i64: 8, 32>}, {transform_indices = @transform_2, window_bounds = array<i64: 8, 1>}, {transform_indices = @transform_3, window_bounds = array<i64: 1, 8>}, {transform_indices = @transform_4, window_bounds = array<i64: 8, 1>}, {transform_indices = @transform_5, window_bounds = array<i64: 8, 1>}, {transform_indices = @transform_6, window_bounds = array<i64: 8, 1>}]} {
    %c0_i32 = arith.constant 0 : i32
    %0 = arith.cmpi eq, %arg1, %c0_i32 : i32
    %c0_i32_0 = arith.constant 0 : i32
    %1 = arith.cmpi eq, %arg2, %c0_i32_0 : i32
    %2 = arith.andi %0, %1 : i1
    %3 = arith.extui %2 : i1 to i32
    %c0_i32_1 = arith.constant 0 : i32
    %4 = arith.cmpi ne, %3, %c0_i32_1 : i32
    scf.if %4 {
      %cst_25 = arith.constant 0.000000e+00 : f32
      %35 = vector.broadcast %cst_25 : f32 to vector<8x1xf32>
      %c0_26 = arith.constant 0 : index
      %c0_27 = arith.constant 0 : index
      %36 = vector.load %arg10[%c0_26, %c0_27] : memref<8x1xf32, #tpu.memory_space<vmem>>, vector<8x1xf32>
      tpu.vector_store %arg10[%c0_26, %c0_27], %35 {strides = array<i32>} : memref<8x1xf32, #tpu.memory_space<vmem>>, vector<8x1xf32>,
      %cst_28 = arith.constant 0.000000e+00 : f32
      %37 = vector.broadcast %cst_28 : f32 to vector<8x1xf32>
      %c0_29 = arith.constant 0 : index
      %c0_30 = arith.constant 0 : index
      %38 = vector.load %arg11[%c0_29, %c0_30] : memref<8x1xf32, #tpu.memory_space<vmem>>, vector<8x1xf32>
      tpu.vector_store %arg11[%c0_29, %c0_30], %37 {strides = array<i32>} : memref<8x1xf32, #tpu.memory_space<vmem>>, vector<8x1xf32>,
    } else {
    }
    %c0 = arith.constant 0 : index
    %c0_2 = arith.constant 0 : index
    %5 = vector.load %arg3[%c0, %c0_2] : memref<8x32xf32, #tpu.memory_space<vmem>>, vector<8x32xf32>
    %c0_3 = arith.constant 0 : index
    %c0_4 = arith.constant 0 : index
    %6 = vector.load %arg4[%c0_3, %c0_4] : memref<8x32xf32, #tpu.memory_space<vmem>>, vector<8x32xf32>
    %cst = arith.constant dense<0.000000e+00> : vector<8x8xf32>
    %7 = tpu.matmul %5, %6, %cst {dimension_numbers = #tpu.dot_dimension_numbers<[1], [1], [0], [0], [0, 0, 1, 0], [], []>} : vector<8x32xf32>, vector<8x32xf32>, vector<8x8xf32> -> vector<8x8xf32>
    %c0_5 = arith.constant 0 : index
    %c0_6 = arith.constant 0 : index
    %8 = vector.load %arg5[%c0_5, %c0_6] : memref<8x1xi32, #tpu.memory_space<vmem>>, vector<8x1xi32>
    %c0_7 = arith.constant 0 : index
    %c0_8 = arith.constant 0 : index
    %9 = vector.load %arg6[%c0_7, %c0_8] : memref<1x8xi32, #tpu.memory_space<vmem>>, vector<1x8xi32>
    %10 = vector.broadcast %8 : vector<8x1xi32> to vector<8x8xi32>
    %11 = vector.broadcast %9 : vector<1x8xi32> to vector<8x8xi32>
    %12 = arith.cmpi eq, %10, %11 : vector<8x8xi32>
    %c0_9 = arith.constant 0 : index
    %c0_10 = arith.constant 0 : index
    %13 = vector.load %arg7[%c0_9, %c0_10] : memref<8x1xf32, #tpu.memory_space<vmem>>, vector<8x1xf32>
    %14 = math.exp %7 : vector<8x8xf32>
    %cst_11 = arith.constant 0.000000e+00 : f32
    %15 = vector.broadcast %cst_11 : f32 to vector<8x8xf32>
    %c0_12 = arith.constant 0 : index
    %c0_13 = arith.constant 0 : index
    %16 = vector.load %arg10[%c0_12, %c0_13] : memref<8x1xf32, #tpu.memory_space<vmem>>, vector<8x1xf32>
    %17 = arith.select %12, %15, %14 : vector<8x8xi1>, vector<8x8xf32>
    %cst_14 = arith.constant dense<0.000000e+00> : vector<8xf32>
    %18 = vector.multi_reduction <add>, %17, %cst_14 [1] : vector<8x8xf32> to vector<8xf32>
    %19 = vector.shape_cast %18 : vector<8xf32> to vector<8x1xf32>
    %20 = arith.mulf %13, %19 : vector<8x1xf32>
    %21 = arith.addf %16, %20 : vector<8x1xf32>
    %c0_15 = arith.constant 0 : index
    %c0_16 = arith.constant 0 : index
    %22 = vector.load %arg10[%c0_15, %c0_16] : memref<8x1xf32, #tpu.memory_space<vmem>>, vector<8x1xf32>
    tpu.vector_store %arg10[%c0_15, %c0_16], %21 {strides = array<i32>} : memref<8x1xf32, #tpu.memory_space<vmem>>, vector<8x1xf32>,
    %c0_17 = arith.constant 0 : index
    %c0_18 = arith.constant 0 : index
    %23 = vector.load %arg11[%c0_17, %c0_18] : memref<8x1xf32, #tpu.memory_space<vmem>>, vector<8x1xf32>
    %24 = arith.select %12, %7, %15 : vector<8x8xi1>, vector<8x8xf32>
    %cst_19 = arith.constant dense<0.000000e+00> : vector<8xf32>
    %25 = vector.multi_reduction <add>, %24, %cst_19 [1] : vector<8x8xf32> to vector<8xf32>
    %26 = vector.shape_cast %25 : vector<8xf32> to vector<8x1xf32>
    %27 = arith.mulf %13, %26 : vector<8x1xf32>
    %28 = arith.addf %23, %27 : vector<8x1xf32>
    %c0_20 = arith.constant 0 : index
    %c0_21 = arith.constant 0 : index
    %29 = vector.load %arg11[%c0_20, %c0_21] : memref<8x1xf32, #tpu.memory_space<vmem>>, vector<8x1xf32>
    tpu.vector_store %arg11[%c0_20, %c0_21], %28 {strides = array<i32>} : memref<8x1xf32, #tpu.memory_space<vmem>>, vector<8x1xf32>,
    %c0_i32_22 = arith.constant 0 : i32
    %30 = arith.cmpi eq, %arg1, %c0_i32_22 : i32
    %c0_i32_23 = arith.constant 0 : i32
    %31 = arith.cmpi eq, %arg2, %c0_i32_23 : i32
    %32 = arith.andi %30, %31 : i1
    %33 = arith.extui %32 : i1 to i32
    %c0_i32_24 = arith.constant 0 : i32
    %34 = arith.cmpi ne, %33, %c0_i32_24 : i32
    scf.if %34 {
      %c0_25 = arith.constant 0 : index
      %c0_26 = arith.constant 0 : index
      %35 = vector.load %arg8[%c0_25, %c0_26] : memref<8x1xf32, #tpu.memory_space<vmem>>, vector<8x1xf32>
      %c0_27 = arith.constant 0 : index
      %c0_28 = arith.constant 0 : index
      %36 = vector.load %arg10[%c0_27, %c0_28] : memref<8x1xf32, #tpu.memory_space<vmem>>, vector<8x1xf32>
      %37 = math.log %36 : vector<8x1xf32>
      %c0_29 = arith.constant 0 : index
      %c0_30 = arith.constant 0 : index
      %38 = vector.load %arg11[%c0_29, %c0_30] : memref<8x1xf32, #tpu.memory_space<vmem>>, vector<8x1xf32>
      %cst_31 = arith.constant 1.000000e+00 : f32
      %39 = vector.broadcast %cst_31 : f32 to vector<8x1xf32>
      %40 = arith.maximumf %35, %39 : vector<8x1xf32>
      %41 = arith.divf %38, %40 : vector<8x1xf32>
      %42 = arith.subf %37, %41 : vector<8x1xf32>
      %cst_32 = arith.constant 0.000000e+00 : f32
      %43 = vector.broadcast %cst_32 : f32 to vector<8x1xf32>
      %44 = arith.cmpf ogt, %35, %43 : vector<8x1xf32>
      %cst_33 = arith.constant 0.000000e+00 : f32
      %45 = vector.broadcast %cst_33 : f32 to vector<8x1xf32>
      %46 = arith.select %44, %42, %45 : vector<8x1xi1>, vector<8x1xf32>
      %c0_34 = arith.constant 0 : index
      %c0_35 = arith.constant 0 : index
      %47 = vector.load %arg9[%c0_34, %c0_35] : memref<8x1xf32, #tpu.memory_space<vmem>>, vector<8x1xf32>
      tpu.vector_store %arg9[%c0_34, %c0_35], %46 {strides = array<i32>} : memref<8x1xf32, #tpu.memory_space<vmem>>, vector<8x1xf32>,
    } else {
    }
    return
  }
  func.func @transform_0(%arg0: i32, %arg1: i32, %arg2: i32) -> (i32, i32) {
    %c0_i32 = arith.constant 0 : i32
    %c0_i32_0 = arith.constant 0 : i32
    return %arg0, %c0_i32 : i32, i32
  }
  func.func @transform_1(%arg0: i32, %arg1: i32, %arg2: i32) -> (i32, i32) {
    %c1_i32 = arith.constant 1 : i32
    %0 = arith.muli %arg1, %c1_i32 : i32
    %1 = arith.addi %0, %arg2 : i32
    %c0_i32 = arith.constant 0 : i32
    %c0_i32_0 = arith.constant 0 : i32
    return %1, %c0_i32 : i32, i32
  }
  func.func @transform_2(%arg0: i32, %arg1: i32, %arg2: i32) -> (i32, i32) {
    %c0_i32 = arith.constant 0 : i32
    %c0_i32_0 = arith.constant 0 : i32
    return %arg0, %c0_i32 : i32, i32
  }
  func.func @transform_3(%arg0: i32, %arg1: i32, %arg2: i32) -> (i32, i32) {
    %c0_i32 = arith.constant 0 : i32
    %c0_i32_0 = arith.constant 0 : i32
    return %c0_i32, %arg2 : i32, i32
  }
  func.func @transform_4(%arg0: i32, %arg1: i32, %arg2: i32) -> (i32, i32) {
    %c1_i32 = arith.constant 1 : i32
    %0 = arith.muli %arg1, %c1_i32 : i32
    %1 = arith.addi %0, %arg0 : i32
    %c0_i32 = arith.constant 0 : i32
    %c0_i32_0 = arith.constant 0 : i32
    return %1, %c0_i32 : i32, i32
  }
  func.func @transform_5(%arg0: i32, %arg1: i32, %arg2: i32) -> (i32, i32) {
    %c0_i32 = arith.constant 0 : i32
    %c0_i32_0 = arith.constant 0 : i32
    return %arg0, %c0_i32 : i32, i32
  }
  func.func @transform_6(%arg0: i32, %arg1: i32, %arg2: i32) -> (i32, i32) {
    %c0_i32 = arith.constant 0 : i32
    %c0_i32_0 = arith.constant 0 : i32
    return %arg0, %c0_i32 : i32, i32
  }
}

</mosaic_0001>

<llo_original>
// kernel: tpu_custom_call.1
$region0: #{tpu_custom_call.1}
  #allocation0 [shape = 'u32[]', space=smem, size = 0x4, offset = 0x4, fixed_abs, tag = 'smem constant byte address 0x4 - core index']
  #allocation1 [shape = 'u32[144,128]{1,0:T(1,128)}', space=vmem, size = 0x12000, scoped, tag = 'internal scratch']
  #allocation2 [shape = 'f32[8,1]{1,0:T(8,128)}', space=vmem, size = 0x1000, scoped, tag = 'scratch operand']
  #allocation3 [shape = 'f32[8,1]{1,0:T(8,128)}', space=vmem, size = 0x1000, scoped, tag = 'scratch operand']
  %s0 = inlined_call_operand.vmem [shape: f32[8,32], index: 0, kind: input, shape index: {}]
  %s1 = inlined_call_operand.vmem [shape: f32[8,32], index: 1, kind: input, shape index: {}]
  %s2 = inlined_call_operand.vmem [shape: s32[8,1], index: 2, kind: input, shape index: {}]
  %s3 = inlined_call_operand.vmem [shape: s32[1,8], index: 3, kind: input, shape index: {}]
  %s4 = inlined_call_operand.vmem [shape: f32[8,1], index: 4, kind: input, shape index: {}]
  %s5 = inlined_call_operand.vmem [shape: f32[8,1], index: 5, kind: input, shape index: {}]
  %s6 = inlined_call_operand.vmem [shape: f32[8,1], index: 6, kind: output, shape index: {}]
  %s7 = sld [smem:[#allocation0]]
  $region42: #{tpu_custom_call.1} parent=0
    _
  %s9 = ssub.s32 1, %s7
  %s10 = scalar_select 0, %s9, %s7
  // Predicated region
  $region2: #{tpu_custom_call.1} parent=0 // pred_check
    _
  $region3: #{tpu_custom_call.1} parent=0 // pred_check_branch
    %12 = sbr.rel (0) target = $region5
  $region4: #{tpu_custom_call.1} parent=0 // pred_region
    _
  $region5: #{tpu_custom_call.1} parent=0 // pred_fallthru
    _
  // Predicated region
  $region6: #{tpu_custom_call.1} parent=0 // pred_check
    _
  $region7: #{tpu_custom_call.1} parent=0 // pred_check_branch
    %14 = sbr.rel (0) target = $region9
  $region8: #{tpu_custom_call.1} parent=0 // pred_region
    %s15 = sadd.s32 0, 0
    %p16 = scmp.lt.s32.totalorder %s15, 0
    %s17 = scalar_select %p16, %s15, 0
    %s18 = smul.addr %s17, 8
    %s19 = scalar_lea.vmem %s1, %s18
    %s20 = sadd.s32 0, 0
  $region9: #{tpu_custom_call.1} parent=0 // pred_fallthru
    _
  // Predicated region
  $region10: #{tpu_custom_call.1} parent=0 // pred_check
    _
  $region11: #{tpu_custom_call.1} parent=0 // pred_check_branch
    %22 = sbr.rel (0) target = $region13
  $region12: #{tpu_custom_call.1} parent=0 // pred_region
    _
  $region13: #{tpu_custom_call.1} parent=0 // pred_fallthru
    _
  // Predicated region
  $region14: #{tpu_custom_call.1} parent=0 // pred_check
    _
  $region15: #{tpu_custom_call.1} parent=0 // pred_check_branch
    %24 = sbr.rel (0) target = $region17
  $region16: #{tpu_custom_call.1} parent=0 // pred_region
    _
  $region17: #{tpu_custom_call.1} parent=0 // pred_fallthru
    _
  // Predicated region
  $region18: #{tpu_custom_call.1} parent=0 // pred_check
    _
  $region19: #{tpu_custom_call.1} parent=0 // pred_check_branch
    %26 = sbr.rel (0) target = $region21
  $region20: #{tpu_custom_call.1} parent=0 // pred_region
    %s27 = sadd.s32 0, 0
    %p28 = scmp.lt.s32.totalorder %s27, 0
    %s29 = scalar_select %p28, %s27, 0
    %s30 = smul.addr %s29, 8
    %s31 = scalar_lea.vmem %s4, %s30
    %s32 = sadd.s32 0, 0
  $region21: #{tpu_custom_call.1} parent=0 // pred_fallthru
    _
  // Predicated region
  $region22: #{tpu_custom_call.1} parent=0 // pred_check
    _
  $region23: #{tpu_custom_call.1} parent=0 // pred_check_branch
    %34 = sbr.rel (0) target = $region25
  $region24: #{tpu_custom_call.1} parent=0 // pred_region
    _
  $region25: #{tpu_custom_call.1} parent=0 // pred_fallthru
    _
  %s35 = sadd.s32 0, 0
  %p36 = scmp.lt.s32.totalorder %s35, 0
  %s37 = scalar_select %p36, %s35, 0
  %s38 = smul.addr %s37, 8
  %s39 = scalar_lea.vmem %s1, %s38
  %s40 = sadd.s32 0, 0
  %p41 = scmp.lt.s32.totalorder %s40, 0
  %s42 = scalar_select %p41, %s40, 0
  %s43 = smul.addr %s42, 8
  %s44 = scalar_lea.vmem %s4, %s43
  %s45 = sadd.s32 0, 0
  %p46 = scmp.lt.s32.totalorder %s45, 0
  %s47 = scalar_select %p46, %s45, 0
  %s48 = smul.addr %s47, 8
  %s49 = scalar_lea.vmem %s1, %s48
  %s50 = sadd.s32 0, 0
  %s51 = sadd.s32 0, 0
  %p52 = scmp.lt.s32.totalorder %s51, 0
  %s53 = scalar_select %p52, %s51, 0
  %s54 = smul.addr %s53, 8
  %s55 = scalar_lea.vmem %s4, %s54
  %s56 = sadd.s32 0, 0
  %p57 = scmp.eq.s32.totalorder 0, 0
  %p58 = scmp.eq.s32.totalorder 0, 0
  %p59 = pnand %p57, %p58
  %p60 = pneg %p59
  // Predicated region
  $region26: #{tpu_custom_call.1} parent=0 // pred_check
    _
  $region27: #{tpu_custom_call.1} parent=0 // pred_check_branch
    %62 = sbr.rel (%p59) target = $region29
  $region28: #{tpu_custom_call.1} parent=0 // pred_region
    %vm63 = vcmask 7168
    %64 = vst.msk [vmem:[#allocation2] sm:$0xff] %vm63, 0.0
    %65 = vst.msk [vmem:[#allocation3] sm:$0xff] %vm63, 0.0
  $region29: #{tpu_custom_call.1} parent=0 // pred_fallthru
    _
  %v66 = vld [vmem:[%s0] sm:$0xff]
  %v67 = vld [vmem:[%s49] sm:$0xff]
  %vm68 = vcmask 261120
  %v70 = vsel %vm68, %v66, 0
  %v73 = vsel %vm68, %v67, 0
  %75 = vmatprep.subr.mxu0 0.0
  %76 = vmatpush1.xpose.msra.mxu0 %v73
  %77 = vmatprep.subr.mxu0 0.0
  %78 = vmatpush1.xpose.msra.mxu0 0.0
  %79 = vmatprep.subr.mxu0 0.0
  %80 = vmatpush1.xpose.msra.mxu0 0.0
  %81 = vmatprep.subr.mxu0 0.0
  %82 = vmatpush1.xpose.msra.mxu0 0.0
  %83 = vmatprep.subr.mxu0 0.0
  %84 = vmatpush1.xpose.msra.mxu0 0.0
  %85 = vmatprep.subr.mxu0 0.0
  %86 = vmatpush1.xpose.msra.mxu0 0.0
  %87 = vmatprep.subr.mxu0 0.0
  %88 = vmatpush1.xpose.msra.mxu0 0.0
  %89 = vmatprep.subr.mxu0 0.0
  %90 = vmatpush1.xpose.msra.mxu0 0.0
  %91 = vmatprep.subr.mxu0 0.0
  %92 = vmatpush1.xpose.msra.mxu0 0.0
  %93 = vmatprep.subr.mxu0 0.0
  %94 = vmatpush1.xpose.msra.mxu0 0.0
  %95 = vmatprep.subr.mxu0 0.0
  %96 = vmatpush1.xpose.msra.mxu0 0.0
  %97 = vmatprep.subr.mxu0 0.0
  %98 = vmatpush1.xpose.msra.mxu0 0.0
  %99 = vmatprep.subr.mxu0 0.0
  %100 = vmatpush1.xpose.msra.mxu0 0.0
  %101 = vmatprep.subr.mxu0 0.0
  %102 = vmatpush1.xpose.msra.mxu0 0.0
  %103 = vmatprep.subr.mxu0 0.0
  %104 = vmatpush1.xpose.msra.mxu0 0.0
  %105 = vmatprep.subr.mxu0 0.0
  %106 = vmatpush1.xpose.msra.mxu0 0.0
  %107 = vmatprep.subr.mxu0 0.0
  %108 = vmatpush1.xpose.msra.mxu0 0.0
  %109 = vmatprep.subr.mxu0 0.0
  %110 = vmatpush1.xpose.msra.mxu0 0.0
  %111 = vmatprep.subr.mxu0 0.0
  %112 = vmatpush1.xpose.msra.mxu0 0.0
  %113 = vmatprep.subr.mxu0 0.0
  %114 = vmatpush1.xpose.msra.mxu0 0.0
  %115 = vmatprep.subr.mxu0 0.0
  %116 = vmatpush1.xpose.msra.mxu0 0.0
  %117 = vmatprep.subr.mxu0 0.0
  %118 = vmatpush1.xpose.msra.mxu0 0.0
  %119 = vmatprep.subr.mxu0 0.0
  %120 = vmatpush1.xpose.msra.mxu0 0.0
  %121 = vmatprep.subr.mxu0 0.0
  %122 = vmatpush1.xpose.msra.mxu0 0.0
  %123 = vmatprep.subr.mxu0 0.0
  %124 = vmatpush1.xpose.msra.mxu0 0.0
  %125 = vmatprep.subr.mxu0 0.0
  %126 = vmatpush1.xpose.msra.mxu0 0.0
  %127 = vmatprep.subr.mxu0 0.0
  %128 = vmatpush1.xpose.msra.mxu0 0.0
  %129 = vmatprep.subr.mxu0 0.0
  %130 = vmatpush1.xpose.msra.mxu0 0.0
  %131 = vmatprep.subr.mxu0 0.0
  %132 = vmatpush1.xpose.msra.mxu0 0.0
  %133 = vmatprep.subr.mxu0 0.0
  %134 = vmatpush1.xpose.msra.mxu0 0.0
  %135 = vmatprep.subr.mxu0 0.0
  %136 = vmatpush1.xpose.msra.mxu0 0.0
  %137 = vmatprep.subr.mxu0 0.0
  %138 = vmatpush1.xpose.msra.mxu0 0.0
  %139 = vmatprep.mubr.f32.mxu0 0.0
  %140 = vmatmul.mubr.f32.gmra.mrb[0].mxu0 %v70
  %v141 = vpop.f32.mrb[0].mxu0
  %v142 = vadd.f32 0.0, %v141
  %v143 = vpop.f32.mrb[0].mxu0
  %144 = vdwg.mxu0
  %v145 = vld [vmem:[%s2] sm:$0xff]
  %v146 = vld [vmem:[%s3] sm:$0x1]
  %147 = vset.pattern.permute.xlu0 0
  %148 = vperm.xlu0 %147, %v145
  %v149 = vpop.permute.xlu0 %148
  %v150 = vlaneseq
  %v151 = vshrl.u32 %v150, 7
  %v152 = vsub.s32 0, %v151
  %v153 = vrot.slane %v146, %v152
  %vm154 = vcmp.eq.s32.totalorder %v149, %v153
  %v155 = vld [vmem:[%s55] sm:$0xff]
  %v156 = vmul.f32 %v142, 1.442695
  %v157 = vpow.pop %v156
  %v158 = vld [vmem:[#allocation2] sm:$0xff]
  %v159 = vsel %vm154, 0.0, %v157
  %vm160 = vcmask 64512
  %v161 = vsel %vm160, %v159, 0.0
  %162 = vadd.xlane.f32.xlu0 %v161
  %v163 = vpop.xlane.xlu0 %162
  %v164 = vmul.f32 %v155, %v163
  %v165 = vadd.f32 %v158, %v164
  %vm166 = vcmask 7168
  %167 = vst.msk [vmem:[#allocation2] sm:$0xff] %vm166, %v165
  %v168 = vld [vmem:[#allocation3] sm:$0xff]
  %v169 = vsel %vm154, %v142, 0.0
  %v170 = vsel %vm160, %v169, 0.0
  %171 = vadd.xlane.f32.xlu0 %v170
  %v172 = vpop.xlane.xlu0 %171
  %v173 = vmul.f32 %v155, %v172
  %v174 = vadd.f32 %v168, %v173
  %175 = vst.msk [vmem:[#allocation3] sm:$0xff] %vm166, %v174
  // Predicated region
  $region30: #{tpu_custom_call.1} parent=0 // pred_check
    _
  $region31: #{tpu_custom_call.1} parent=0 // pred_check_branch
    %177 = sbr.rel (%p59) target = $region33
  $region32: #{tpu_custom_call.1} parent=0 // pred_region
    %v178 = vld [vmem:[%s5] sm:$0xff]
    %v179 = vld [vmem:[#allocation2] sm:$0xff]
    %v180 = vlog2.pop %v179
    %v181 = vmul.f32 %v180, 0.6931472
    %v182 = vld [vmem:[#allocation3] sm:$0xff]
    %v183 = vmax.f32 %v178, 1.0
    %v184 = vrcp.pop %v183
    %v185 = vmul.f32 %v182, %v184
    %v186 = vsub.f32 %v181, %v185
    %vm187 = vcmp.gt.f32.partialorder %v178, 0.0
    %v188 = vsel %vm187, %v186, 0.0
    %189 = vst.msk [vmem:[%s6] sm:$0xff] %vm166, %v188
  $region33: #{tpu_custom_call.1} parent=0 // pred_fallthru
    _
  // Predicated region
  $region34: #{tpu_custom_call.1} parent=0 // pred_check
    _
  $region35: #{tpu_custom_call.1} parent=0 // pred_check_branch
    %191 = sbr.rel (0) target = $region37
  $region36: #{tpu_custom_call.1} parent=0 // pred_region
    _
  $region37: #{tpu_custom_call.1} parent=0 // pred_fallthru
    _
  // Predicated region
  $region38: #{tpu_custom_call.1} parent=0 // pred_check
    _
  $region39: #{tpu_custom_call.1} parent=0 // pred_check_branch
    %193 = sbr.rel (0) target = $region41
  $region40: #{tpu_custom_call.1} parent=0 // pred_region
    _
  $region41: #{tpu_custom_call.1} parent=0 // pred_fallthru
    _

</llo_original>
